<compile_context>
chip_gen: v5e
topology: v5e:2x2
jax: 0.10.0
libtpu: 0.0.40
codegen_flags: <defaults>
</compile_context>

<pallas_src>
import functools

import jax
import jax.numpy as jnp
from jax import lax
from jax.experimental import pallas as pl
from jax.experimental.pallas import tpu as pltpu


def _preact_block_kernel(x_ref, m_ref, w1_ref, w2_ref, bn_ref, o_ref, *,
                         s, Ho, Wo, Wu, Cin, Cout, has_ds):
    """One batch element per grid step.

    x_ref:  (s*s, Cin, Lx)  zero-padded, polyphase-split, spatially-flattened raw input
    m_ref:  (s*s, Lx)       1.0 on real pixels, 0.0 on pad (lane-dense, VMEM-resident)
    w1_ref: (Cout, 9*Cin)   conv1 weight^T (bn2 scale folded in), bf16
    w2_ref: (Cout, 9*Cout [+Cin]) conv2 weight^T, shortcut 1x1 conv fused as extra cols, bf16
    bn_ref: (Cmax, 3)       packed [bn1_scale | bn1_bias | bn2_bias]
    o_ref:  (Cout, Ho*Wu)   wide-grid output (Wu = Wo+2; extra columns stripped in wrapper)
    """
    Lo = Ho * Wu
    bn1s = bn_ref[0:Cin, 0:1]            # (Cin, 1)
    bn1b = bn_ref[0:Cin, 1:2]
    bn2b = bn_ref[0:Cout, 2:3]           # (Cout, 1)

    # ---- hoisted bn1 affine + ReLU + pad-zeroing: once per polyphase plane, not per tap.
    acts = []
    for p in range(s * s):
        xp = x_ref[p, :, :]                                   # (Cin, Lx) f32
        mp = m_ref[p:p + 1, :]                                 # (1, Lx)
        acts.append((jnp.maximum(xp * bn1s + bn1b, 0.0) * mp).astype(jnp.bfloat16))

    # ---- conv1 (3x3, stride s) as ONE im2col matmul; taps are contiguous lane slices.
    slabs = []
    for dy in range(3):
        for dx in range(3):
            p = (dy % s) * s + (dx % s)                        # polyphase plane
            off = (dy // s) * Wu + (dx // s)                   # flat lane offset
            slabs.append(acts[p][:, off:off + Lo])
    pat1 = jnp.concatenate(slabs, axis=0)                      # (9*Cin, Lo) bf16
    y1 = jnp.dot(w1_ref[...], pat1, preferred_element_type=jnp.float32)   # (Cout, Lo) f32
    y1 = jnp.maximum(y1 + bn2b, 0.0)                           # bn2 bias + relu (scale in w1)

    # Plane/offset of the stride-s, offset-(1,1) sampling: used by the shortcut, and its
    # mask slab is exactly the valid-wide-column mask of the output grid.
    pr = (1 % s) * s + (1 % s)
    offr = (1 // s) * Wu + (1 // s)
    vmask = m_ref[pr:pr + 1, offr:offr + Lo]                   # (1, Lo)
    y1 = (y1 * vmask).astype(jnp.bfloat16)

    # ---- zero-padded conv2 input via a pure lane shift (no 2-D scratch round-trip):
    # prepend/append Wu+1 zeros; the masked invalid columns become the pad borders.
    zpad = jnp.zeros((Cout, Wu + 1), jnp.bfloat16)
    ypad = jnp.concatenate([zpad, y1, zpad], axis=1)           # (Cout, Lo + 2*Wu + 2)

    # ---- conv2 (3x3, stride 1) as one im2col matmul; 1x1 shortcut fused as extra K rows.
    slabs2 = [ypad[:, dy * Wu + dx: dy * Wu + dx + Lo]
              for dy in range(3) for dx in range(3)]
    xres = x_ref[pr, :, offr:offr + Lo]                        # raw strided x, (Cin, Lo) f32
    if has_ds:
        slabs2.append(xres.astype(jnp.bfloat16))
        out = jnp.dot(w2_ref[...], jnp.concatenate(slabs2, axis=0),
                      preferred_element_type=jnp.float32)
    else:
        # identity shortcut: add the raw strided input in f32 (no matmul, no rounding)
        out = jnp.dot(w2_ref[...], jnp.concatenate(slabs2, axis=0),
                      preferred_element_type=jnp.float32) + xres
    o_ref[...] = out.astype(o_ref.dtype)


def _prep_planes(x_pad, s, Hu, Wu, Lx):
    """Polyphase-split a zero-padded NCHW tensor by stride s, pad each plane to (Hu, Wu),
    flatten spatially: out[n, a*s+b, c, i*Wu + j] == x_pad[n, c, s*i + a, s*j + b]."""
    N, C, Hp, Wp = x_pad.shape
    Hq, Wq = -(-Hp // s), -(-Wp // s)
    x = jnp.pad(x_pad, ((0, 0), (0, 0), (0, s * Hq - Hp), (0, s * Wq - Wp)))
    x = x.reshape(N, C, Hq, s, Wq, s).transpose(0, 3, 5, 1, 2, 4)
    x = x.reshape(N, s * s, C, Hq, Wq)
    x = jnp.pad(x, ((0, 0), (0, 0), (0, 0), (0, Hu - Hq), (0, Wu - Wq)))
    x = x.reshape(N, s * s, C, Hu * Wu)
    return jnp.pad(x, ((0, 0), (0, 0), (0, 0), (0, Lx - Hu * Wu)))


def preact_basic_block(x_nchw, params, stride):
    """x_nchw: (N, Cin, H, W) float32. Returns (N, Cout, Ho, Wo) float32."""
    N, Cin, H, W = x_nchw.shape
    Cout = params["w1"].shape[-1]
    s = int(stride)
    Ho = (H - 1) // s + 1
    Wo = (W - 1) // s + 1
    Hu, Wu = Ho + 2, Wo + 2                 # uniform wide-grid row stride Wu = Wo + 2
    Lo = Ho * Wu
    has_ds = params.get("wd") is not None
    if not has_ds:
        assert Cin == Cout and s == 1, "identity shortcut needs inplanes==planes, stride==1"

    # flat plane length: large enough that every static tap slice stays in bounds
    maxoff = (2 // s) * (Wu + 1)
    Lx = max(Hu * Wu, maxoff + Lo)

    # zero-pad (pad=1) once, polyphase-split by the stride, flatten spatially
    x_pad = jnp.pad(x_nchw, ((0, 0), (0, 0), (1, 1), (1, 1)))
    x_planes = _prep_planes(x_pad, s, Hu, Wu, Lx)                       # (N, s*s, Cin, Lx)

    # lane-dense flat mask of real (non-pad) pixels; VMEM-resident across the grid
    m_pad = jnp.pad(jnp.ones((1, 1, H, W), jnp.float32),
                    ((0, 0), (0, 0), (1, 1), (1, 1)))
    m_planes = _prep_planes(m_pad, s, Hu, Wu, Lx)[0, :, 0, :]           # (s*s, Lx)
    SS = s * s

    # weights in (Cout, K) orientation, bf16 for the MXU; bn2 scale folded into w1 in f32
    w1_t = (params["w1"].reshape(9 * Cin, Cout)
            * params["bn2_scale"].reshape(1, Cout)).T.astype(jnp.bfloat16)   # (Cout, 9*Cin)
    w2_flat = params["w2"].reshape(9 * Cout, Cout)
    if has_ds:
        w2_flat = jnp.concatenate([w2_flat, params["wd"]], axis=0)      # fuse 1x1 shortcut
    w2_t = w2_flat.T.astype(jnp.bfloat16)                               # (Cout, K2)
    K2 = w2_t.shape[1]

    # pack the three bn vectors into one small operand (one padded VMEM tile instead of 3)
    Cmax = max(Cin, Cout)
    bn_pack = jnp.zeros((Cmax, 3), jnp.float32)
    bn_pack = bn_pack.at[:Cin, 0].set(params["bn1_scale"])
    bn_pack = bn_pack.at[:Cin, 1].set(params["bn1_bias"])
    bn_pack = bn_pack.at[:Cout, 2].set(params["bn2_bias"])

    kernel = functools.partial(_preact_block_kernel, s=s, Ho=Ho, Wo=Wo, Wu=Wu,
                               Cin=Cin, Cout=Cout, has_ds=has_ds)

    out_flat = pl.pallas_call(
        kernel,
        out_shape=jax.ShapeDtypeStruct((N, Cout, Lo), jnp.float32),
        grid=(N,),
        in_specs=[
            pl.BlockSpec((None, SS, Cin, Lx), lambda n: (n, 0, 0, 0)),
            pl.BlockSpec((SS, Lx), lambda n: (0, 0)),
            pl.BlockSpec((Cout, 9 * Cin), lambda n: (0, 0)),
            pl.BlockSpec((Cout, K2), lambda n: (0, 0)),
            pl.BlockSpec((Cmax, 3), lambda n: (0, 0)),
        ],
        out_specs=pl.BlockSpec((None, Cout, Lo), lambda n: (n, 0, 0)),
        compiler_params=pltpu.CompilerParams(
            dimension_semantics=("parallel",)),     # N>=2 -> both v7x TensorCores busy
    )(x_planes, m_planes, w1_t, w2_t, bn_pack)

    # strip the wide-grid scratch columns; result is NCHW like the PyTorch module
    return out_flat.reshape(N, Cout, Ho, Wu)[:, :, :, :Wo]


def ref_forward(x, params, stride):
    """Pure-JAX f32 reference (NCHW), mirrors PyTorch PreActBasicBlock.forward."""
    dn = ("NCHW", "HWIO", "NCHW")
    Cin = x.shape[1]
    Cout = params["w1"].shape[-1]
    s1 = params["bn1_scale"].reshape(1, Cin, 1, 1)
    b1 = params["bn1_bias"].reshape(1, Cin, 1, 1)
    s2 = params["bn2_scale"].reshape(1, Cout, 1, 1)
    b2 = params["bn2_bias"].reshape(1, Cout, 1, 1)
    if params.get("wd") is not None:
        residual = lax.conv_general_dilated(
            x, params["wd"].reshape(1, 1, Cin, Cout), (stride, stride), "VALID",
            dimension_numbers=dn)
    else:
        residual = x
    t = jnp.maximum(x * s1 + b1, 0.0)
    y = lax.conv_general_dilated(t, params["w1"], (stride, stride),
                                 [(1, 1), (1, 1)], dimension_numbers=dn)
    y = jnp.maximum(y * s2 + b2, 0.0)
    y = lax.conv_general_dilated(y, params["w2"], (1, 1),
                                 [(1, 1), (1, 1)], dimension_numbers=dn)
    return y + residual


def make_params(key, inplanes, planes):
    ks = jax.random.split(key, 10)
    eps = 1e-5
    w1 = 0.1 * jax.random.normal(ks[0], (3, 3, inplanes, planes), jnp.float32)
    w2 = 0.1 * jax.random.normal(ks[1], (3, 3, planes, planes), jnp.float32)
    wd = (0.1 * jax.random.normal(ks[2], (inplanes, planes), jnp.float32)
          if inplanes != planes else None)          # identity shortcut when shapes match

    g1 = 1.0 + 0.1 * jax.random.normal(ks[3], (inplanes,), jnp.float32)
    be1 = 0.1 * jax.random.normal(ks[4], (inplanes,), jnp.float32)
    m1 = 0.1 * jax.random.normal(ks[5], (inplanes,), jnp.float32)
    v1 = jax.random.uniform(ks[6], (inplanes,), jnp.float32, 0.5, 1.5)
    g2 = 1.0 + 0.1 * jax.random.normal(ks[7], (planes,), jnp.float32)
    be2 = 0.1 * jax.random.normal(ks[8], (planes,), jnp.float32)
    m2 = 0.1 * jax.random.normal(ks[9], (planes,), jnp.float32)
    v2 = jnp.linspace(0.6, 1.4, planes, dtype=jnp.float32)

    bn1_scale = g1 / jnp.sqrt(v1 + eps)
    bn1_bias = be1 - m1 * bn1_scale
    bn2_scale = g2 / jnp.sqrt(v2 + eps)
    bn2_bias = be2 - m2 * bn2_scale
    return dict(w1=w1, w2=w2, wd=wd,
                bn1_scale=bn1_scale, bn1_bias=bn1_bias,
                bn2_scale=bn2_scale, bn2_bias=bn2_bias)


if __name__ == "__main__":
    N, H, W = 2, 16, 16
    configs = [
        (4, 8, 1),   # inplanes != planes -> 1x1-conv downsample, stride 1 (primary)
        (8, 8, 1),   # identity shortcut
        (4, 8, 2),   # 1x1-conv downsample, stride 2
    ]

    key = jax.random.PRNGKey(0)
    for (cin, cout, stride) in configs:
        key, kx, kp = jax.random.split(key, 3)
        x = jax.random.normal(kx, (N, cin, H, W), jnp.float32)   # NCHW, like PyTorch
        params = make_params(kp, cin, cout)

        out = jax.block_until_ready(preact_basic_block(x, params, stride))
        ref = jax.block_until_ready(ref_forward(x, params, stride))
        err = float(jnp.max(jnp.abs(out - ref)))
        scale = float(jnp.max(jnp.abs(ref)))
        # matmul operands are bf16 (per perf review) -> loosened, scale-aware tolerance
        assert err < 5e-2 * max(1.0, scale), \
            f"config {(cin, cout, stride)}: max abs err {err} (ref scale {scale})"

    print("KERNEL_OK")
</pallas_src>

<mosaic_0001>
module attributes {stable_mosaic.version = 11 : i64} {
  func.func @_preact_block_kernel(%arg0: i32, %arg1: memref<1x1x4x326xf32, #tpu.memory_space<vmem>>, %arg2: memref<1x326xf32, #tpu.memory_space<vmem>>, %arg3: memref<8x36xbf16, #tpu.memory_space<vmem>>, %arg4: memref<8x76xbf16, #tpu.memory_space<vmem>>, %arg5: memref<8x3xf32, #tpu.memory_space<vmem>>, %arg6: memref<1x8x288xf32, #tpu.memory_space<vmem>>) attributes {dimension_semantics = [#tpu.dimension_semantics<parallel>], iteration_bounds = array<i64: 2>, scalar_prefetch = 0 : i64, scratch_operands = 0 : i64, tpu.core_type = #tpu.core_type<tc>, window_params = [{transform_indices = @transform_0, window_bounds = array<i64: 1, 1, 4, 326>}, {pipeline_mode = #tpu.pipeline_mode<synchronous>, transform_indices = @transform_1, window_bounds = array<i64: 1, 326>}, {pipeline_mode = #tpu.pipeline_mode<synchronous>, transform_indices = @transform_2, window_bounds = array<i64: 8, 36>}, {pipeline_mode = #tpu.pipeline_mode<synchronous>, transform_indices = @transform_3, window_bounds = array<i64: 8, 76>}, {pipeline_mode = #tpu.pipeline_mode<synchronous>, transform_indices = @transform_4, window_bounds = array<i64: 8, 3>}, {transform_indices = @transform_5, window_bounds = array<i64: 1, 8, 288>}]} {
    %c0 = arith.constant 0 : index
    %c0_0 = arith.constant 0 : index
    %0 = vector.load %arg5[%c0, %c0_0] : memref<8x3xf32, #tpu.memory_space<vmem>>, vector<4x1xf32>
    %c0_1 = arith.constant 0 : index
    %c1 = arith.constant 1 : index
    %1 = vector.load %arg5[%c0_1, %c1] : memref<8x3xf32, #tpu.memory_space<vmem>>, vector<4x1xf32>
    %c0_2 = arith.constant 0 : index
    %c2 = arith.constant 2 : index
    %2 = vector.load %arg5[%c0_2, %c2] : memref<8x3xf32, #tpu.memory_space<vmem>>, vector<8x1xf32>
    %c0_3 = arith.constant 0 : index
    %c0_4 = arith.constant 0 : index
    %c0_5 = arith.constant 0 : index
    %c0_6 = arith.constant 0 : index
    %3 = vector.load %arg1[%c0_3, %c0_4, %c0_5, %c0_6] : memref<1x1x4x326xf32, #tpu.memory_space<vmem>>, vector<1x1x4x326xf32>
    %4 = vector.shape_cast %3 : vector<1x1x4x326xf32> to vector<4x326xf32>
    %c0_7 = arith.constant 0 : index
    %c0_8 = arith.constant 0 : index
    %5 = vector.load %arg2[%c0_7, %c0_8] : memref<1x326xf32, #tpu.memory_space<vmem>>, vector<1x326xf32>
    %6 = vector.broadcast %0 : vector<4x1xf32> to vector<4x326xf32>
    %7 = arith.mulf %4, %6 : vector<4x326xf32>
    %8 = vector.broadcast %1 : vector<4x1xf32> to vector<4x326xf32>
    %9 = arith.addf %7, %8 : vector<4x326xf32>
    %cst = arith.constant 0.000000e+00 : f32
    %10 = vector.broadcast %cst : f32 to vector<4x326xf32>
    %11 = arith.maximumf %9, %10 : vector<4x326xf32>
    %12 = vector.broadcast %5 : vector<1x326xf32> to vector<4x326xf32>
    %13 = arith.mulf %11, %12 : vector<4x326xf32>
    %14 = arith.truncf %13 : vector<4x326xf32> to vector<4x326xbf16>
    %15 = vector.extract_strided_slice %14 {offsets = [0, 0], sizes = [4, 288], strides = [1, 1]} : vector<4x326xbf16> to vector<4x288xbf16>
    %16 = vector.extract_strided_slice %14 {offsets = [0, 1], sizes = [4, 288], strides = [1, 1]} : vector<4x326xbf16> to vector<4x288xbf16>
    %17 = vector.extract_strided_slice %14 {offsets = [0, 2], sizes = [4, 288], strides = [1, 1]} : vector<4x326xbf16> to vector<4x288xbf16>
    %18 = vector.extract_strided_slice %14 {offsets = [0, 18], sizes = [4, 288], strides = [1, 1]} : vector<4x326xbf16> to vector<4x288xbf16>
    %19 = vector.extract_strided_slice %14 {offsets = [0, 19], sizes = [4, 288], strides = [1, 1]} : vector<4x326xbf16> to vector<4x288xbf16>
    %20 = vector.extract_strided_slice %14 {offsets = [0, 20], sizes = [4, 288], strides = [1, 1]} : vector<4x326xbf16> to vector<4x288xbf16>
    %21 = vector.extract_strided_slice %14 {offsets = [0, 36], sizes = [4, 288], strides = [1, 1]} : vector<4x326xbf16> to vector<4x288xbf16>
    %22 = vector.extract_strided_slice %14 {offsets = [0, 37], sizes = [4, 288], strides = [1, 1]} : vector<4x326xbf16> to vector<4x288xbf16>
    %23 = vector.extract_strided_slice %14 {offsets = [0, 38], sizes = [4, 288], strides = [1, 1]} : vector<4x326xbf16> to vector<4x288xbf16>
    %24 = tpu.concatenate %15, %16, %17, %18, %19, %20, %21, %22, %23 in 0 : vector<4x288xbf16>, vector<4x288xbf16>, vector<4x288xbf16>, vector<4x288xbf16>, vector<4x288xbf16>, vector<4x288xbf16>, vector<4x288xbf16>, vector<4x288xbf16>, vector<4x288xbf16> -> vector<36x288xbf16>
    %c0_9 = arith.constant 0 : index
    %c0_10 = arith.constant 0 : index
    %25 = vector.load %arg3[%c0_9, %c0_10] : memref<8x36xbf16, #tpu.memory_space<vmem>>, vector<8x36xbf16>
    %cst_11 = arith.constant dense<0.000000e+00> : vector<8x288xf32>
    %26 = tpu.matmul %25, %24, %cst_11 {dimension_numbers = #tpu.dot_dimension_numbers<[1], [0], [0], [1], [0, 0, 1, 1], [], []>} : vector<8x36xbf16>, vector<36x288xbf16>, vector<8x288xf32> -> vector<8x288xf32>
    %27 = vector.broadcast %2 : vector<8x1xf32> to vector<8x288xf32>
    %28 = arith.addf %26, %27 : vector<8x288xf32>
    %cst_12 = arith.constant 0.000000e+00 : f32
    %29 = vector.broadcast %cst_12 : f32 to vector<8x288xf32>
    %30 = arith.maximumf %28, %29 : vector<8x288xf32>
    %c0_13 = arith.constant 0 : index
    %c19 = arith.constant 19 : index
    %31 = vector.load %arg2[%c0_13, %c19] : memref<1x326xf32, #tpu.memory_space<vmem>>, vector<1x288xf32>
    %32 = vector.broadcast %31 : vector<1x288xf32> to vector<8x288xf32>
    %33 = arith.mulf %30, %32 : vector<8x288xf32>
    %34 = arith.truncf %33 : vector<8x288xf32> to vector<8x288xbf16>
    %cst_14 = arith.constant 0.000000e+00 : bf16
    %35 = vector.broadcast %cst_14 : bf16 to vector<8x19xbf16>
    %36 = tpu.concatenate %35, %34, %35 in 1 : vector<8x19xbf16>, vector<8x288xbf16>, vector<8x19xbf16> -> vector<8x326xbf16>
    %37 = vector.extract_strided_slice %36 {offsets = [0, 0], sizes = [8, 288], strides = [1, 1]} : vector<8x326xbf16> to vector<8x288xbf16>
    %38 = vector.extract_strided_slice %36 {offsets = [0, 1], sizes = [8, 288], strides = [1, 1]} : vector<8x326xbf16> to vector<8x288xbf16>
    %39 = vector.extract_strided_slice %36 {offsets = [0, 2], sizes = [8, 288], strides = [1, 1]} : vector<8x326xbf16> to vector<8x288xbf16>
    %40 = vector.extract_strided_slice %36 {offsets = [0, 18], sizes = [8, 288], strides = [1, 1]} : vector<8x326xbf16> to vector<8x288xbf16>
    %41 = vector.extract_strided_slice %36 {offsets = [0, 19], sizes = [8, 288], strides = [1, 1]} : vector<8x326xbf16> to vector<8x288xbf16>
    %42 = vector.extract_strided_slice %36 {offsets = [0, 20], sizes = [8, 288], strides = [1, 1]} : vector<8x326xbf16> to vector<8x288xbf16>
    %43 = vector.extract_strided_slice %36 {offsets = [0, 36], sizes = [8, 288], strides = [1, 1]} : vector<8x326xbf16> to vector<8x288xbf16>
    %44 = vector.extract_strided_slice %36 {offsets = [0, 37], sizes = [8, 288], strides = [1, 1]} : vector<8x326xbf16> to vector<8x288xbf16>
    %45 = vector.extract_strided_slice %36 {offsets = [0, 38], sizes = [8, 288], strides = [1, 1]} : vector<8x326xbf16> to vector<8x288xbf16>
    %c0_15 = arith.constant 0 : index
    %c0_16 = arith.constant 0 : index
    %c0_17 = arith.constant 0 : index
    %c19_18 = arith.constant 19 : index
    %46 = vector.load %arg1[%c0_15, %c0_16, %c0_17, %c19_18] : memref<1x1x4x326xf32, #tpu.memory_space<vmem>>, vector<1x1x4x288xf32>
    %47 = vector.shape_cast %46 : vector<1x1x4x288xf32> to vector<4x288xf32>
    %48 = arith.truncf %47 : vector<4x288xf32> to vector<4x288xbf16>
    %c0_19 = arith.constant 0 : index
    %c0_20 = arith.constant 0 : index
    %49 = vector.load %arg4[%c0_19, %c0_20] : memref<8x76xbf16, #tpu.memory_space<vmem>>, vector<8x76xbf16>
    %50 = tpu.concatenate %37, %38, %39, %40, %41, %42, %43, %44, %45, %48 in 0 : vector<8x288xbf16>, vector<8x288xbf16>, vector<8x288xbf16>, vector<8x288xbf16>, vector<8x288xbf16>, vector<8x288xbf16>, vector<8x288xbf16>, vector<8x288xbf16>, vector<8x288xbf16>, vector<4x288xbf16> -> vector<76x288xbf16>
    %cst_21 = arith.constant dense<0.000000e+00> : vector<8x288xf32>
    %51 = tpu.matmul %49, %50, %cst_21 {dimension_numbers = #tpu.dot_dimension_numbers<[1], [0], [0], [1], [0, 0, 1, 1], [], []>} : vector<8x76xbf16>, vector<76x288xbf16>, vector<8x288xf32> -> vector<8x288xf32>
    %c0_22 = arith.constant 0 : index
    %c0_23 = arith.constant 0 : index
    %c0_24 = arith.constant 0 : index
    %52 = vector.load %arg6[%c0_22, %c0_23, %c0_24] : memref<1x8x288xf32, #tpu.memory_space<vmem>>, vector<1x8x288xf32>
    %53 = vector.shape_cast %52 : vector<1x8x288xf32> to vector<8x288xf32>
    %54 = vector.shape_cast %51 : vector<8x288xf32> to vector<1x8x288xf32>
    tpu.vector_store %arg6[%c0_22, %c0_23, %c0_24], %54 {strides = array<i32>} : memref<1x8x288xf32, #tpu.memory_space<vmem>>, vector<1x8x288xf32>,
    return
  }
  func.func @transform_0(%arg0: i32) -> (i32, i32, i32, i32) {
    %c0_i32 = arith.constant 0 : i32
    %c0_i32_0 = arith.constant 0 : i32
    %c0_i32_1 = arith.constant 0 : i32
    %c0_i32_2 = arith.constant 0 : i32
    return %arg0, %c0_i32, %c0_i32_0, %c0_i32_1 : i32, i32, i32, i32
  }
  func.func @transform_1(%arg0: i32) -> (i32, i32) {
    %c0_i32 = arith.constant 0 : i32
    %c0_i32_0 = arith.constant 0 : i32
    %c0_i32_1 = arith.constant 0 : i32
    return %c0_i32, %c0_i32_0 : i32, i32
  }
  func.func @transform_2(%arg0: i32) -> (i32, i32) {
    %c0_i32 = arith.constant 0 : i32
    %c0_i32_0 = arith.constant 0 : i32
    %c0_i32_1 = arith.constant 0 : i32
    return %c0_i32, %c0_i32_0 : i32, i32
  }
  func.func @transform_3(%arg0: i32) -> (i32, i32) {
    %c0_i32 = arith.constant 0 : i32
    %c0_i32_0 = arith.constant 0 : i32
    %c0_i32_1 = arith.constant 0 : i32
    return %c0_i32, %c0_i32_0 : i32, i32
  }
  func.func @transform_4(%arg0: i32) -> (i32, i32) {
    %c0_i32 = arith.constant 0 : i32
    %c0_i32_0 = arith.constant 0 : i32
    %c0_i32_1 = arith.constant 0 : i32
    return %c0_i32, %c0_i32_0 : i32, i32
  }
  func.func @transform_5(%arg0: i32) -> (i32, i32, i32) {
    %c0_i32 = arith.constant 0 : i32
    %c0_i32_0 = arith.constant 0 : i32
    %c0_i32_1 = arith.constant 0 : i32
    return %arg0, %c0_i32, %c0_i32_0 : i32, i32, i32
  }
}

</mosaic_0001>

<llo_original>
// kernel: tpu_custom_call.1
$region0: #{tpu_custom_call.1}
  #allocation0 [shape = 'u32[]', space=smem, size = 0x4, offset = 0x4, fixed_abs, tag = 'smem constant byte address 0x4 - core index']
  #allocation1 [shape = 'u32[72,128]{1,0:T(1,128)}', space=vmem, size = 0x9000, scoped, tag = 'internal scratch']
  %s0 = inlined_call_operand.hbm [shape: f32[2,1,4,326], index: 0, kind: input, shape index: {}]
  %s1 = inlined_call_operand.vmem [shape: f32[1,326], index: 1, kind: input, shape index: {}]
  %s2 = inlined_call_operand.vmem [shape: bf16[8,36], index: 2, kind: input, shape index: {}]
  %s3 = inlined_call_operand.vmem [shape: bf16[8,76], index: 3, kind: input, shape index: {}]
  %s4 = inlined_call_operand.vmem [shape: f32[8,3], index: 4, kind: input, shape index: {}]
  %s5 = inlined_call_operand.hbm [shape: f32[2,8,288], index: 5, kind: output, shape index: {}]
  %s6 = sld [smem:[#allocation0]]
  $region57: #{tpu_custom_call.1} parent=0
    _
  %s8 = ssub.s32 1, %s6
  %s9 = scalar_select 0, %s8, %s6
  $region1: #{tpu_custom_call.1} parent=0
    #allocation2 [shape = 'u8[12288]{0}', space=vmem, size = 0x3000, scoped, tag = 'input window, operand 0']
    #allocation3 [shape = 's32[2]{0}', space=sflag, size = 0x8, scoped, tag = 'scoped memory for tpu_custom_call.1']
    #allocation4 [shape = 's32[2]{0}', space=sflag, size = 0x8, scoped, tag = 'scoped memory for tpu_custom_call.1']
    #allocation5 [shape = 'u8[24576]{0}', space=vmem, size = 0x6000, scoped, tag = 'output window, operand 0']
    %10 = vsyncpa [#allocation3], 0
    %s11 = scalar_lea.sflag [#allocation3], 1
    %12 = vsyncpa %s11, 0
    %13 = vsyncpa [#allocation4], 0
    %s14 = scalar_lea.sflag [#allocation4], 1
    %15 = vsyncpa %s14, 0
    loop: start=0, step=1, limit=4
    $region2: #{tpu_custom_call.1} parent=1 // loop_pre_header
      _
    $region3: #{tpu_custom_call.1} parent=1 // loop_header
      %s17 = sphi 0, %s21
      %p18 = scmp.ge.s32.totalorder %s17, 4
      %s27 = sphi 0, %s29
      %s30 = sphi 0, %s27
      %s31 = sphi 0, %s30
      %s47 = sphi 0, %s31
      %s51 = sphi 0, %s51
      %s53 = sphi 0, %s51
      %s54 = sphi 0, %s53
      %s68 = sphi 0, %s54
      %s72 = sphi 0, %s72
      %s74 = sphi 0, %s72
      %s75 = sphi 0, %s74
      %s89 = sphi 0, %s75
      %s93 = sphi 0, %s93
      %s95 = sphi 0, %s93
      %s96 = sphi 0, %s95
      %s110 = sphi 0, %s96
      %s114 = sphi 0, %s114
      %s116 = sphi 0, %s114
      %s117 = sphi 0, %s116
      %s131 = sphi 0, %s117
      %s137 = sphi 0, %s139
      %s140 = sphi 0, %s137
      %s141 = sphi 0, %s140
      %s157 = sphi 0, %s141
    $region4: #{tpu_custom_call.1} parent=1 // loop_header_branch
      %20 = sbr.rel (%p18) target = $region8
    $region5: #{tpu_custom_call.1} parent=1 // loop_body
      %s22 = ssub.s32 %s17, 1
      %s23 = ssub.s32 %s17, 2
      %s24 = sadd.s32 %s17, 1
      %s25 = ssub.s32 %s17, %s24
      %p26 = scmp.eq.s32.totalorder %s25, 0
      %s28 = sadd.s32 %s27, 1
      %s29 = scalar_select %p26, %s27, %s28
      %p32 = pneg %p26
      %p33 = scmp.eq.s32.totalorder %s17, 1
      %p34 = por %p32, %p33
      %p35 = scmp.ne.s32.totalorder %s27, %s30
      %p36 = scmp.eq.s32.totalorder %s17, 0
      %p37 = por %p35, %p36
      %p38 = scmp.ne.s32.totalorder %s27, %s30
      %p39 = scmp.eq.s32.totalorder %s22, 1
      %p40 = por %p38, %p39
      %p41 = scmp.ne.s32.totalorder %s30, %s31
      %p42 = scmp.eq.s32.totalorder %s22, 0
      %p43 = por %p41, %p42
      %p44 = scmp.ne.s32.totalorder %s30, %s31
      %p45 = scmp.eq.s32.totalorder %s23, 1
      %p46 = por %p44, %p45
      %p48 = scmp.ne.s32.totalorder %s31, %s47
      %p49 = scmp.eq.s32.totalorder %s23, 0
      %p50 = por %p48, %p49
      %s52 = sadd.s32 %s51, 1
      %p55 = scmp.eq.s32.totalorder %s17, 1
      %p56 = scmp.ne.s32.totalorder %s51, %s53
      %p57 = scmp.eq.s32.totalorder %s17, 0
      %p58 = por %p56, %p57
      %p59 = scmp.ne.s32.totalorder %s51, %s53
      %p60 = scmp.eq.s32.totalorder %s22, 1
      %p61 = por %p59, %p60
      %p62 = scmp.ne.s32.totalorder %s53, %s54
      %p63 = scmp.eq.s32.totalorder %s22, 0
      %p64 = por %p62, %p63
      %p65 = scmp.ne.s32.totalorder %s53, %s54
      %p66 = scmp.eq.s32.totalorder %s23, 1
      %p67 = por %p65, %p66
      %p69 = scmp.ne.s32.totalorder %s54, %s68
      %p70 = scmp.eq.s32.totalorder %s23, 0
      %p71 = por %p69, %p70
      %s73 = sadd.s32 %s72, 1
      %p76 = scmp.eq.s32.totalorder %s17, 1
      %p77 = scmp.ne.s32.totalorder %s72, %s74
      %p78 = scmp.eq.s32.totalorder %s17, 0
      %p79 = por %p77, %p78
      %p80 = scmp.ne.s32.totalorder %s72, %s74
      %p81 = scmp.eq.s32.totalorder %s22, 1
      %p82 = por %p80, %p81
      %p83 = scmp.ne.s32.totalorder %s74, %s75
      %p84 = scmp.eq.s32.totalorder %s22, 0
      %p85 = por %p83, %p84
      %p86 = scmp.ne.s32.totalorder %s74, %s75
      %p87 = scmp.eq.s32.totalorder %s23, 1
      %p88 = por %p86, %p87
      %p90 = scmp.ne.s32.totalorder %s75, %s89
      %p91 = scmp.eq.s32.totalorder %s23, 0
      %p92 = por %p90, %p91
      %s94 = sadd.s32 %s93, 1
      %p97 = scmp.eq.s32.totalorder %s17, 1
      %p98 = scmp.ne.s32.totalorder %s93, %s95
      %p99 = scmp.eq.s32.totalorder %s17, 0
      %p100 = por %p98, %p99
      %p101 = scmp.ne.s32.totalorder %s93, %s95
      %p102 = scmp.eq.s32.totalorder %s22, 1
      %p103 = por %p101, %p102
      %p104 = scmp.ne.s32.totalorder %s95, %s96
      %p105 = scmp.eq.s32.totalorder %s22, 0
      %p106 = por %p104, %p105
      %p107 = scmp.ne.s32.totalorder %s95, %s96
      %p108 = scmp.eq.s32.totalorder %s23, 1
      %p109 = por %p107, %p108
      %p111 = scmp.ne.s32.totalorder %s96, %s110
      %p112 = scmp.eq.s32.totalorder %s23, 0
      %p113 = por %p111, %p112
      %s115 = sadd.s32 %s114, 1
      %p118 = scmp.eq.s32.totalorder %s17, 1
      %p119 = scmp.ne.s32.totalorder %s114, %s116
      %p120 = scmp.eq.s32.totalorder %s17, 0
      %p121 = por %p119, %p120
      %p122 = scmp.ne.s32.totalorder %s114, %s116
      %p123 = scmp.eq.s32.totalorder %s22, 1
      %p124 = por %p122, %p123
      %p125 = scmp.ne.s32.totalorder %s116, %s117
      %p126 = scmp.eq.s32.totalorder %s22, 0
      %p127 = por %p125, %p126
      %p128 = scmp.ne.s32.totalorder %s116, %s117
      %p129 = scmp.eq.s32.totalorder %s23, 1
      %p130 = por %p128, %p129
      %p132 = scmp.ne.s32.totalorder %s117, %s131
      %p133 = scmp.eq.s32.totalorder %s23, 0
      %p134 = por %p132, %p133
      %s135 = ssub.s32 %s17, %s24
      %p136 = scmp.eq.s32.totalorder %s135, 0
      %s138 = sadd.s32 %s137, 1
      %s139 = scalar_select %p136, %s137, %s138
      %p142 = pneg %p136
      %p143 = scmp.eq.s32.totalorder %s17, 1
      %p144 = por %p142, %p143
      %p145 = scmp.ne.s32.totalorder %s137, %s140
      %p146 = scmp.eq.s32.totalorder %s17, 0
      %p147 = por %p145, %p146
      %p148 = scmp.ne.s32.totalorder %s137, %s140
      %p149 = scmp.eq.s32.totalorder %s22, 1
      %p150 = por %p148, %p149
      %p151 = scmp.ne.s32.totalorder %s140, %s141
      %p152 = scmp.eq.s32.totalorder %s22, 0
      %p153 = por %p151, %p152
      %p154 = scmp.ne.s32.totalorder %s140, %s141
      %p155 = scmp.eq.s32.totalorder %s23, 1
      %p156 = por %p154, %p155
      %p158 = scmp.ne.s32.totalorder %s141, %s157
      %p159 = scmp.eq.s32.totalorder %s23, 0
      %p160 = por %p158, %p159
      %p161 = scmp.le.s32.totalorder 1, %s17
      %p162 = scmp.lt.s32.totalorder %s17, 3
      %p163 = pnand %p161, %p162
      %p164 = pneg %p163
      // Predicated region
      $region9: #{tpu_custom_call.1} parent=5 // pred_check
        _
      $region10: #{tpu_custom_call.1} parent=5 // pred_check_branch
        %166 = sbr.rel (%p163) target = $region12
      $region11: #{tpu_custom_call.1} parent=5 // pred_region
        %s167 = ssub.s32 %s17, 1
        // Predicated region
        $region13: #{tpu_custom_call.1} parent=11 // pred_check
          %p168 = pneg %p64
        $region14: #{tpu_custom_call.1} parent=11 // pred_check_branch
          %170 = sbr.rel (%p168) target = $region16
        $region15: #{tpu_custom_call.1} parent=11 // pred_region
          _
        $region16: #{tpu_custom_call.1} parent=11 // pred_fallthru
          _
        // Predicated region
        $region17: #{tpu_custom_call.1} parent=11 // pred_check
          %p171 = pneg %p85
        $region18: #{tpu_custom_call.1} parent=11 // pred_check_branch
          %173 = sbr.rel (%p171) target = $region20
        $region19: #{tpu_custom_call.1} parent=11 // pred_region
          _
        $region20: #{tpu_custom_call.1} parent=11 // pred_fallthru
          _
        // Predicated region
        $region21: #{tpu_custom_call.1} parent=11 // pred_check
          %p174 = pneg %p106
        $region22: #{tpu_custom_call.1} parent=11 // pred_check_branch
          %176 = sbr.rel (%p174) target = $region24
        $region23: #{tpu_custom_call.1} parent=11 // pred_region
          _
        $region24: #{tpu_custom_call.1} parent=11 // pred_fallthru
          _
        // Predicated region
        $region25: #{tpu_custom_call.1} parent=11 // pred_check
          %p177 = pneg %p127
        $region26: #{tpu_custom_call.1} parent=11 // pred_check_branch
          %179 = sbr.rel (%p177) target = $region28
        $region27: #{tpu_custom_call.1} parent=11 // pred_region
          _
        $region28: #{tpu_custom_call.1} parent=11 // pred_fallthru
          _
      $region12: #{tpu_custom_call.1} parent=5 // pred_fallthru
        _
      %p180 = scmp.lt.s32.totalorder %s17, 2
      // Predicated region
      $region29: #{tpu_custom_call.1} parent=5 // pred_check
        %p181 = pneg %p180
      $region30: #{tpu_custom_call.1} parent=5 // pred_check_branch
        %183 = sbr.rel (%p181) target = $region32
      $region31: #{tpu_custom_call.1} parent=5 // pred_region
        // Predicated region
        $region33: #{tpu_custom_call.1} parent=31 // pred_check
          %p184 = pneg %p37
        $region34: #{tpu_custom_call.1} parent=31 // pred_check_branch
          %186 = sbr.rel (%p184) target = $region36
        $region35: #{tpu_custom_call.1} parent=31 // pred_region
          %s187 = sand.u32 %s27, 1
          %s188 = scalar_lea.sflag [#allocation3], %s187
          %s189 = sand.u32 %s27, 1
          %s190 = smul.addr %s189, 12
          %s191 = scalar_lea.vmem [#allocation2], %s190
          %193 = vsyncadd %s188, 0
          %s194 = smul.addr %s17, 3
          %s195 = smul.addr %s194, 4
          %s196 = scalar_lea.hbm %s0, %s195
          %s198 = sshll.u32 %s196, 4
          %s199 = int_to_ptr.hbm [resolvable:$true] %s198
          %s200 = sshll.u32 %s191, 4
          %s201 = int_to_ptr.vmem [resolvable:$true] %s200
          %203 = dma.hbm_to_vmem [thread:$0]  %s199, 192, %s201, %s188
        $region36: #{tpu_custom_call.1} parent=31 // pred_fallthru
          _
      $region32: #{tpu_custom_call.1} parent=5 // pred_fallthru
        _
      %p204 = scmp.le.s32.totalorder 1, %s17
      %p205 = scmp.lt.s32.totalorder %s17, 3
      %p206 = pnand %p204, %p205
      %p207 = pneg %p206
      // Predicated region
      $region37: #{tpu_custom_call.1} parent=5 // pred_check
        _
      $region38: #{tpu_custom_call.1} parent=5 // pred_check_branch
        %209 = sbr.rel (%p206) target = $region40
      $region39: #{tpu_custom_call.1} parent=5 // pred_region
        %s210 = ssub.s32 %s17, 1
        %s211 = sand.u32 %s30, 1
        %s212 = scalar_lea.sflag [#allocation3], %s211
        %s213 = sand.u32 %s30, 1
        %s214 = smul.addr %s213, 12
        %s215 = scalar_lea.vmem [#allocation2], %s214
        // Predicated region
        $region41: #{tpu_custom_call.1} parent=39 // pred_check
          %p216 = pneg %p43
        $region42: #{tpu_custom_call.1} parent=39 // pred_check_branch
          %218 = sbr.rel (%p216) target = $region44
        $region43: #{tpu_custom_call.1} parent=39 // pred_region
          %220 = dma.done %s212, 192
        $region44: #{tpu_custom_call.1} parent=39 // pred_fallthru
          _
        %s221 = sand.u32 %s30, 1
        %s222 = scalar_lea.sflag [#allocation3], %s221
        %s223 = sand.u32 %s30, 1
        %s224 = smul.addr %s223, 12
        %s225 = scalar_lea.vmem [#allocation2], %s224
        %p226 = pneg %p43
        %p227 = pneg %p40
        %p228 = pneg %p64
        %p229 = pneg %p61
        %p230 = pneg %p85
        %p231 = pneg %p82
        %p232 = pneg %p106
        %p233 = pneg %p103
        %p234 = pneg %p127
        %p235 = pneg %p124
        %p236 = pneg %p153
        %p237 = pneg %p150
        %s238 = sand.u32 %s140, 1
        %s239 = scalar_lea.sflag [#allocation4], %s238
        %s240 = sand.u32 %s140, 1
        %s241 = smul.addr %s240, 24
        %s242 = scalar_lea.vmem [#allocation5], %s241
        %v244 = vld [vmem:[%s4] sm:$0xf]
        %v245 = vld [vmem:[%s4] sm:$0xff]
        %v246 = vld [vmem:[%s215] sm:$0xff]
        %v247 = vld [vmem:[%s215 + $0x8] sm:$0xf]
        %v248 = vld [vmem:[%s1] sm:$0x7]
        %250 = vset.pattern.permute.xlu0 0
        %251 = vperm.xlu0 %250, %v244
        %v252 = vpop.permute.xlu0 %251
        %v254 = vunpack.c.l.s4 839922192
        %v255 = vunpack.c.0.s8 %v254
        %v256 = vperm.slane %v252, %v255
        %v258 = vmul.f32 %v246, %v256
        %v259 = vmul.f32 %v247, %v256
        %260 = vset.pattern.permute.xlu0 1
        %261 = vperm.xlu0 %260, %v244
        %v262 = vpop.permute.xlu0 %261
        %v264 = vunpack.c.l.s4 839922192
        %v265 = vunpack.c.0.s8 %v264
        %v266 = vperm.slane %v262, %v265
        %v268 = vadd.f32 %v258, %v266
        %v269 = vadd.f32 %v259, %v266
        %v270 = vmax.f32 %v268, 0.0
        %v271 = vmax.f32 %v269, 0.0
        %v273 = vperm.slane %v248, 0
        %v274 = vperm.slane %v248, 1
        %v275 = vperm.slane %v248, 2
        %v277 = vrot.slane %v274, 4
        %vm278 = vcmask 1043456
        %v279 = vsel %vm278, %v273, %v277
        %v281 = vmul.f32 %v270, %v279
        %v282 = vmul.f32 %v271, %v275
        %285 = vst [vmem:[#allocation1] ss:$2 sm:$0xff] %v281
        %s286 = scalar_lea.vmem [#allocation1], 16
        %287 = vst [vmem:[%s286] ss:$2 sm:$0xff] %v282
        %v288 = vld.sshfl [vmem:[#allocation1] sm:$0xff pattern:$0x75316420]
        %v289 = vld.sshfl [vmem:[#allocation1 + $0x8] sm:$0xff pattern:$0x75316420]
        %v290 = vld.sshfl [vmem:[#allocation1 + $0x10] sm:$0xff pattern:$0x75316420]
        %v294 = vpack.c.bf16 %v289, %v288
        %v295 = vpack.c.bf16 %v290, %v290
        %v298 = vunpack.c.l.b16 %v294
        %v299 = vunpack.c.h.b16 %v294
        %v300 = vunpack.c.l.b16 %v295
        %v301 = vpack.c.b16 %v298, %v298
        %v302 = vpack.c.b16 %v299, %v299
        %v303 = vpack.c.b16 %v300, %v300
        %v304 = vrot.slane %v301, 6
        %v305 = vrot.slane %v302, 6
        %v306 = vrot.slane %v303, 6
        %307 = vrot.lane.b32.xlu0 %v304, 127
        %v308 = vpop.permute.xlu0 %307
        %309 = vrot.lane.b32.xlu0 %v305, 127
        %v310 = vpop.permute.xlu0 %309
        %311 = vrot.lane.b32.xlu0 %v306, 127
        %v312 = vpop.permute.xlu0 %311
        %vm313 = vcmask 1039360
        %v314 = vsel %vm313, %v308, %v310
        %v315 = vsel %vm313, %v310, %v312
        %316 = vrot.lane.b32.xlu0 %v301, 126
        %v317 = vpop.permute.xlu0 %316
        %318 = vrot.lane.b32.xlu0 %v302, 126
        %v319 = vpop.permute.xlu0 %318
        %320 = vrot.lane.b32.xlu0 %v303, 126
        %v321 = vpop.permute.xlu0 %320
        %vm322 = vcmask 1031168
        %v323 = vsel %vm322, %v317, %v319
        %v324 = vsel %vm322, %v319, %v321
        %v325 = vrot.slane %v301, 2
        %v326 = vrot.slane %v302, 2
        %v327 = vrot.slane %v303, 2
        %328 = vrot.lane.b32.xlu0 %v325, 110
        %v329 = vpop.permute.xlu0 %328
        %330 = vrot.lane.b32.xlu0 %v326, 110
        %v331 = vpop.permute.xlu0 %330
        %332 = vrot.lane.b32.xlu0 %v327, 110
        %v333 = vpop.permute.xlu0 %332
        %vm334 = vcmask 900096
        %v335 = vsel %vm334, %v329, %v331
        %v336 = vsel %vm334, %v331, %v333
        %337 = vrot.lane.b32.xlu0 %v301, 109
        %v338 = vpop.permute.xlu0 %337
        %339 = vrot.lane.b32.xlu0 %v302, 109
        %v340 = vpop.permute.xlu0 %339
        %341 = vrot.lane.b32.xlu0 %v303, 109
        %v342 = vpop.permute.xlu0 %341
        %vm343 = vcmask 891904
        %v344 = vsel %vm343, %v338, %v340
        %v345 = vsel %vm343, %v340, %v342
        %346 = vrot.lane.b32.xlu0 %v304, 108
        %v347 = vpop.permute.xlu0 %346
        %348 = vrot.lane.b32.xlu0 %v305, 108
        %v349 = vpop.permute.xlu0 %348
        %350 = vrot.lane.b32.xlu0 %v306, 108
        %v351 = vpop.permute.xlu0 %350
        %vm352 = vcmask 883712
        %v353 = vsel %vm352, %v347, %v349
        %v354 = vsel %vm352, %v349, %v351
        %355 = vrot.lane.b32.xlu0 %v301, 92
        %v356 = vpop.permute.xlu0 %355
        %357 = vrot.lane.b32.xlu0 %v302, 92
        %v358 = vpop.permute.xlu0 %357
        %359 = vrot.lane.b32.xlu0 %v303, 92
        %v360 = vpop.permute.xlu0 %359
        %vm361 = vcmask 752640
        %v362 = vsel %vm361, %v356, %v358
        %v363 = vsel %vm361, %v358, %v360
        %364 = vrot.lane.b32.xlu0 %v325, 91
        %v365 = vpop.permute.xlu0 %364
        %366 = vrot.lane.b32.xlu0 %v326, 91
        %v367 = vpop.permute.xlu0 %366
        %368 = vrot.lane.b32.xlu0 %v327, 91
        %v369 = vpop.permute.xlu0 %368
        %vm370 = vcmask 744448
        %v371 = vsel %vm370, %v365, %v367
        %v372 = vsel %vm370, %v367, %v369
        %373 = vrot.lane.b32.xlu0 %v301, 90
        %v374 = vpop.permute.xlu0 %373
        %375 = vrot.lane.b32.xlu0 %v302, 90
        %v376 = vpop.permute.xlu0 %375
        %377 = vrot.lane.b32.xlu0 %v303, 90
        %v378 = vpop.permute.xlu0 %377
        %vm379 = vcmask 736256
        %v380 = vsel %vm379, %v374, %v376
        %v381 = vsel %vm379, %v376, %v378
        %vm382 = vcmask 1041408
        %v385 = vsel %vm382, %v301, %v314
        %v388 = vsel %vm382, %v302, %v315
        %v391 = vsel %vm382, %v303, %v312
        %v393 = vsel %vm278, %v385, %v323
        %v395 = vsel %vm278, %v388, %v324
        %v397 = vsel %vm278, %v391, %v321
        %vm398 = vcmask 1045504
        %v400 = vsel %vm398, %v393, %v335
        %v403 = vsel %vm398, %v395, %v336
        %v406 = vsel %vm398, %v397, %v333
        %v410 = vsel %vm382, %v344, %v353
        %v413 = vsel %vm382, %v345, %v354
        %v416 = vsel %vm382, %v342, %v351
        %v418 = vsel %vm278, %v410, %v362
        %v420 = vsel %vm278, %v413, %v363
        %v422 = vsel %vm278, %v416, %v360
        %v424 = vsel %vm398, %v418, %v371
        %v427 = vsel %vm398, %v420, %v372
        %v430 = vsel %vm398, %v422, %v369
        %v432 = vld [vmem:[%s2] sm:$0xf]
        %434 = vset.pattern.permute.xlu0 2
        %435 = vperm.xlu0 %434, %v245
        %v436 = vpop.permute.xlu0 %435
        %vm438 = vcmask 293888
        %v440 = vsel %vm438, %v432, 0
        %v443 = vsel %vm382, %v380, 0
        %v446 = vsel %vm382, %v381, 0
        %v449 = vsel %vm382, %v378, 0
        %451 = vmatpush.bf16.msra.mxu0 0
        %452 = vmatpush.bf16.msra.mxu0 0
        %453 = vmatpush.bf16.msra.mxu0 0
        %454 = vmatpush.bf16.msra.mxu0 0
        %455 = vmatpush.bf16.msra.mxu0 0
        %456 = vmatpush.bf16.msra.mxu0 %v443
        %457 = vmatpush.bf16.msra.mxu0 %v424
        %458 = vmatpush.bf16.msra.mxu0 %v400
        %459 = vmatmul.bf16.gmra.mxu0 %v440
        %v460 = vpop.f32.mrf.mxu0
        %v461 = vadd.f32 %v436, %v460
        %v462 = vpop.f32.mrf.mxu0
        %463 = vdwg.mxu0
        %464 = vmatpush.bf16.msra.mxu0 0
        %465 = vmatpush.bf16.msra.mxu0 0
        %466 = vmatpush.bf16.msra.mxu0 0
        %467 = vmatpush.bf16.msra.mxu0 0
        %468 = vmatpush.bf16.msra.mxu0 0
        %469 = vmatpush.bf16.msra.mxu0 %v446
        %470 = vmatpush.bf16.msra.mxu0 %v427
        %471 = vmatpush.bf16.msra.mxu0 %v403
        %472 = vmatmul.bf16.gmra.mxu0 %v440
        %v473 = vpop.f32.mrf.mxu0
        %v474 = vadd.f32 %v436, %v473
        %v475 = vpop.f32.mrf.mxu0
        %476 = vdwg.mxu0
        %477 = vmatpush.bf16.msra.mxu0 0
        %478 = vmatpush.bf16.msra.mxu0 0
        %479 = vmatpush.bf16.msra.mxu0 0
        %480 = vmatpush.bf16.msra.mxu0 0
        %481 = vmatpush.bf16.msra.mxu0 0
        %482 = vmatpush.bf16.msra.mxu0 %v449
        %483 = vmatpush.bf16.msra.mxu0 %v430
        %484 = vmatpush.bf16.msra.mxu0 %v406
        %485 = vmatmul.bf16.gmra.mxu0 %v440
        %v486 = vpop.f32.mrf.mxu0
        %v487 = vadd.f32 %v436, %v486
        %v488 = vpop.f32.mrf.mxu0
        %489 = vdwg.mxu0
        %v490 = vmax.f32 %v461, 0.0
        %v491 = vmax.f32 %v474, 0.0
        %v492 = vmax.f32 %v487, 0.0
        %v493 = vld [vmem:[%s1] sm:$0x7]
        %v495 = vperm.slane %v493, 0
        %v496 = vperm.slane %v493, 1
        %v497 = vperm.slane %v493, 2
        %498 = vrot.lane.b32.xlu0 %v495, 109
        %v499 = vpop.permute.xlu0 %498
        %500 = vrot.lane.b32.xlu0 %v496, 109
        %v501 = vpop.permute.xlu0 %500
        %502 = vrot.lane.b32.xlu0 %v497, 109
        %v503 = vpop.permute.xlu0 %502
        %vm504 = vcmask 891904
        %v505 = vsel %vm504, %v499, %v501
        %v506 = vsel %vm504, %v501, %v503
        %v510 = vmul.f32 %v490, %v505
        %v511 = vmul.f32 %v491, %v506
        %v512 = vmul.f32 %v492, %v503
        %v513 = vpack.c.bf16 %v511, %v510
        %v514 = vpack.c.bf16 %v512, %v512
        %v517 = vunpack.c.l.b16 %v513
        %v518 = vunpack.c.h.b16 %v513
        %v519 = vunpack.c.l.b16 %v514
        %v520 = vpack.c.b16 %v517, %v517
        %v521 = vpack.c.b16 %v518, %v518
        %v522 = vpack.c.b16 %v519, %v519
        %523 = vrot.lane.b32.xlu0 %v520, 19
        %v524 = vpop.permute.xlu0 %523
        %525 = vrot.lane.b32.xlu0 %v521, 19
        %v526 = vpop.permute.xlu0 %525
        %527 = vrot.lane.b32.xlu0 %v522, 19
        %v528 = vpop.permute.xlu0 %527
        %vm529 = vcmask 154624
        %v530 = vsel %vm529, %v524, %v526
        %v531 = vsel %vm529, %v526, %v528
        %vm532 = vcmask 154624
        %v535 = vsel %vm532, 0, %v524
        %vm536 = vcmask 416768
        %v538 = vsel %vm536, %v531, 0
        %v539 = vld [vmem:[%s215] sm:$0xff]
        %v540 = vld [vmem:[%s215 + $0x8] sm:$0xf]
        %543 = vst [vmem:[#allocation1] ss:$2 sm:$0xff] %v539
        %s544 = scalar_lea.vmem [#allocation1], 16
        %545 = vst [vmem:[%s544] ss:$2 sm:$0xff] %v540
        %v546 = vld.sshfl [vmem:[#allocation1] sm:$0xff pattern:$0x75316420]
        %v547 = vld.sshfl [vmem:[#allocation1 + $0x8] sm:$0xff pattern:$0x75316420]
        %v548 = vld.sshfl [vmem:[#allocation1 + $0x10] sm:$0xff pattern:$0x75316420]
        %v552 = vpack.c.bf16 %v547, %v546
        %v553 = vpack.c.bf16 %v548, %v548
        %v554 = vld [vmem:[%s3] sm:$0xf]
        %v557 = vrot.slane %v535, 4
        %v558 = vrot.slane %v530, 4
        %v559 = vrot.slane %v538, 4
        %560 = vrot.lane.b32.xlu0 %v557, 127
        %v561 = vpop.permute.xlu0 %560
        %562 = vrot.lane.b32.xlu0 %v558, 127
        %v563 = vpop.permute.xlu0 %562
        %564 = vrot.lane.b32.xlu0 %v559, 127
        %v565 = vpop.permute.xlu0 %564
        %v566 = vsel %vm313, %v561, %v563
        %v567 = vsel %vm313, %v563, %v565
        %568 = vrot.lane.b32.xlu0 %v535, 126
        %v569 = vpop.permute.xlu0 %568
        %570 = vrot.lane.b32.xlu0 %v530, 126
        %v571 = vpop.permute.xlu0 %570
        %572 = vrot.lane.b32.xlu0 %v538, 126
        %v573 = vpop.permute.xlu0 %572
        %v574 = vsel %vm322, %v569, %v571
        %v575 = vsel %vm322, %v571, %v573
        %576 = vrot.lane.b32.xlu0 %v557, 110
        %v577 = vpop.permute.xlu0 %576
        %578 = vrot.lane.b32.xlu0 %v558, 110
        %v579 = vpop.permute.xlu0 %578
        %580 = vrot.lane.b32.xlu0 %v559, 110
        %v581 = vpop.permute.xlu0 %580
        %v582 = vsel %vm334, %v577, %v579
        %v583 = vsel %vm334, %v579, %v581
        %584 = vrot.lane.b32.xlu0 %v535, 109
        %v585 = vpop.permute.xlu0 %584
        %586 = vrot.lane.b32.xlu0 %v530, 109
        %v587 = vpop.permute.xlu0 %586
        %588 = vrot.lane.b32.xlu0 %v538, 109
        %v589 = vpop.permute.xlu0 %588
        %v590 = vsel %vm343, %v585, %v587
        %v591 = vsel %vm343, %v587, %v589
        %592 = vrot.lane.b32.xlu0 %v557, 108
        %v593 = vpop.permute.xlu0 %592
        %594 = vrot.lane.b32.xlu0 %v558, 108
        %v595 = vpop.permute.xlu0 %594
        %596 = vrot.lane.b32.xlu0 %v559, 108
        %v597 = vpop.permute.xlu0 %596
        %v598 = vsel %vm352, %v593, %v595
        %v599 = vsel %vm352, %v595, %v597
        %600 = vrot.lane.b32.xlu0 %v535, 92
        %v601 = vpop.permute.xlu0 %600
        %602 = vrot.lane.b32.xlu0 %v530, 92
        %v603 = vpop.permute.xlu0 %602
        %604 = vrot.lane.b32.xlu0 %v538, 92
        %v605 = vpop.permute.xlu0 %604
        %v606 = vsel %vm361, %v601, %v603
        %v607 = vsel %vm361, %v603, %v605
        %608 = vrot.lane.b32.xlu0 %v557, 91
        %v609 = vpop.permute.xlu0 %608
        %610 = vrot.lane.b32.xlu0 %v558, 91
        %v611 = vpop.permute.xlu0 %610
        %612 = vrot.lane.b32.xlu0 %v559, 91
        %v613 = vpop.permute.xlu0 %612
        %v614 = vsel %vm370, %v609, %v611
        %v615 = vsel %vm370, %v611, %v613
        %616 = vrot.lane.b32.xlu0 %v535, 90
        %v617 = vpop.permute.xlu0 %616
        %618 = vrot.lane.b32.xlu0 %v530, 90
        %v619 = vpop.permute.xlu0 %618
        %620 = vrot.lane.b32.xlu0 %v538, 90
        %v621 = vpop.permute.xlu0 %620
        %v622 = vsel %vm379, %v617, %v619
        %v623 = vsel %vm379, %v619, %v621
        %v626 = vunpack.c.l.b16 %v552
        %v627 = vunpack.c.h.b16 %v552
        %v628 = vunpack.c.l.b16 %v553
        %v629 = vpack.c.b16 %v626, %v626
        %v630 = vpack.c.b16 %v627, %v627
        %v631 = vpack.c.b16 %v628, %v628
        %632 = vrot.lane.b32.xlu0 %v629, 109
        %v633 = vpop.permute.xlu0 %632
        %634 = vrot.lane.b32.xlu0 %v630, 109
        %v635 = vpop.permute.xlu0 %634
        %636 = vrot.lane.b32.xlu0 %v631, 109
        %v637 = vpop.permute.xlu0 %636
        %v638 = vsel %vm343, %v633, %v635
        %v639 = vsel %vm343, %v635, %v637
        %v641 = vsel %vm278, %v535, %v566
        %v645 = vsel %vm278, %v530, %v567
        %v648 = vsel %vm278, %v538, %v565
        %v652 = vsel %vm278, %v574, %v582
        %v656 = vsel %vm278, %v575, %v583
        %v660 = vsel %vm278, %v573, %v581
        %v664 = vsel %vm278, %v590, %v598
        %v668 = vsel %vm278, %v591, %v599
        %v672 = vsel %vm278, %v589, %v597
        %v676 = vsel %vm278, %v606, %v614
        %v680 = vsel %vm278, %v607, %v615
        %v684 = vsel %vm278, %v605, %v613
        %v688 = vsel %vm278, %v622, %v638
        %v691 = vsel %vm278, %v623, %v639
        %v694 = vsel %vm278, %v621, %v637
        %vm695 = vcmask 621568
        %v697 = vsel %vm695, %v554, 0
        %v699 = vsel %vm398, %v688, 0
        %v701 = vsel %vm398, %v691, 0
        %v703 = vsel %vm398, %v694, 0
        %705 = vmatpush.bf16.msra.mxu0 0
        %706 = vmatpush.bf16.msra.mxu0 0
        %707 = vmatpush.bf16.msra.mxu0 0
        %708 = vmatpush.bf16.msra.mxu0 %v699
        %709 = vmatpush.bf16.msra.mxu0 %v676
        %710 = vmatpush.bf16.msra.mxu0 %v664
        %711 = vmatpush.bf16.msra.mxu0 %v652
        %712 = vmatpush.bf16.msra.mxu0 %v641
        %713 = vmatmul.bf16.gmra.mxu0 %v697
        %v714 = vpop.f32.mrf.mxu0
        %v715 = vadd.f32 0.0, %v714
        %v716 = vpop.f32.mrf.mxu0
        %717 = vdwg.mxu0
        %718 = vmatpush.bf16.msra.mxu0 0
        %719 = vmatpush.bf16.msra.mxu0 0
        %720 = vmatpush.bf16.msra.mxu0 0
        %721 = vmatpush.bf16.msra.mxu0 %v701
        %722 = vmatpush.bf16.msra.mxu0 %v680
        %723 = vmatpush.bf16.msra.mxu0 %v668
        %724 = vmatpush.bf16.msra.mxu0 %v656
        %725 = vmatpush.bf16.msra.mxu0 %v645
        %726 = vmatmul.bf16.gmra.mxu0 %v697
        %v727 = vpop.f32.mrf.mxu0
        %v728 = vadd.f32 0.0, %v727
        %v729 = vpop.f32.mrf.mxu0
        %730 = vdwg.mxu0
        %731 = vmatpush.bf16.msra.mxu0 0
        %732 = vmatpush.bf16.msra.mxu0 0
        %733 = vmatpush.bf16.msra.mxu0 0
        %734 = vmatpush.bf16.msra.mxu0 %v703
        %735 = vmatpush.bf16.msra.mxu0 %v684
        %736 = vmatpush.bf16.msra.mxu0 %v672
        %737 = vmatpush.bf16.msra.mxu0 %v660
        %738 = vmatpush.bf16.msra.mxu0 %v648
        %739 = vmatmul.bf16.gmra.mxu0 %v697
        %v740 = vpop.f32.mrf.mxu0
        %v741 = vadd.f32 0.0, %v740
        %v742 = vpop.f32.mrf.mxu0
        %743 = vdwg.mxu0
        %744 = vst [vmem:[%s242] sm:$0xff] %v715
        %745 = vst [vmem:[%s242 + $0x8] sm:$0xff] %v728
        %vm746 = vcmask 261120
        %747 = vst.msk [vmem:[%s242 + $0x10] sm:$0xff] %vm746, %v741
        %s748 = sand.u32 %s140, 1
        %s749 = scalar_lea.sflag [#allocation4], %s748
        %s750 = sand.u32 %s140, 1
        %s751 = smul.addr %s750, 24
        %s752 = scalar_lea.vmem [#allocation5], %s751
        // Predicated region
        $region45: #{tpu_custom_call.1} parent=39 // pred_check
          %p753 = pneg %p150
        $region46: #{tpu_custom_call.1} parent=39 // pred_check_branch
          %755 = sbr.rel (%p753) target = $region48
        $region47: #{tpu_custom_call.1} parent=39 // pred_region
          %757 = vsyncadd %s749, 0
          %s758 = smul.addr %s22, 3
          %s759 = smul.addr %s758, 8
          %s760 = scalar_lea.hbm %s5, %s759
          %s762 = sshll.u32 %s752, 4
          %s763 = int_to_ptr.vmem [resolvable:$true] %s762
          %s764 = sshll.u32 %s760, 4
          %s765 = int_to_ptr.hbm [resolvable:$true] %s764
          %767 = dma.vmem_to_hbm [thread:$0]  %s763, 384, %s765, %s749
        $region48: #{tpu_custom_call.1} parent=39 // pred_fallthru
          _
      $region40: #{tpu_custom_call.1} parent=5 // pred_fallthru
        _
      %p768 = scmp.le.s32.totalorder 2, %s17
      // Predicated region
      $region49: #{tpu_custom_call.1} parent=5 // pred_check
        %p769 = pneg %p768
      $region50: #{tpu_custom_call.1} parent=5 // pred_check_branch
        %771 = sbr.rel (%p769) target = $region52
      $region51: #{tpu_custom_call.1} parent=5 // pred_region
        %s772 = ssub.s32 %s17, 2
        // Predicated region
        $region53: #{tpu_custom_call.1} parent=51 // pred_check
          %p773 = pneg %p156
        $region54: #{tpu_custom_call.1} parent=51 // pred_check_branch
          %775 = sbr.rel (%p773) target = $region56
        $region55: #{tpu_custom_call.1} parent=51 // pred_region
          %s776 = sand.u32 %s141, 1
          %s777 = scalar_lea.sflag [#allocation4], %s776
          %s778 = sand.u32 %s141, 1
          %s779 = smul.addr %s778, 24
          %s780 = scalar_lea.vmem [#allocation5], %s779
          %782 = dma.done %s777, 384
        $region56: #{tpu_custom_call.1} parent=51 // pred_fallthru
          _
      $region52: #{tpu_custom_call.1} parent=5 // pred_fallthru
        _
    $region6: #{tpu_custom_call.1} parent=1 // loop_footer
      %s21 = sadd.s32 1, %s17
    $region7: #{tpu_custom_call.1} parent=1 // loop_footer_branch
      %16 = sbr.rel target = $region3
    $region8: #{tpu_custom_call.1} parent=1 // loop_exit
      _
    %783 = vsyncpa [#allocation3], 1
    %s784 = scalar_lea.sflag [#allocation3], 1
    %785 = vsyncpa %s784, 1
    %786 = vsyncpa [#allocation4], 1
    %s787 = scalar_lea.sflag [#allocation4], 1
    %788 = vsyncpa %s787, 1

</llo_original>
